<compile_context>
chip_gen: v7x
topology: tpu7x:2x2x1
jax: 0.10.0
libtpu: 0.0.40
codegen_flags: <defaults>
</compile_context>

<pallas_src>
import math

import jax
import jax.numpy as jnp
from jax.experimental import pallas as pl
from jax.experimental.pallas import tpu as pltpu


# ------------------------- Pallas kernel -------------------------

def _affine_kernel(x_ref, ab_ref, o_ref):
    # ab_ref: (2, lane) — row 0 = scale, row 1 = offset.  Sublane-broadcast over
    # the row tile.  y = x * a + b.
    a = ab_ref[0:1, :]
    b = ab_ref[1:2, :]
    x = x_ref[...].astype(a.dtype)
    o_ref[...] = (x * a + b).astype(o_ref.dtype)


# ------------------------- Wrapper -------------------------

def prepare_forward(x, params, *, siren,
                    target_block_bytes=2 << 20,
                    small_cutoff_bytes=1 << 20):
    """Apply the `Prepare` module forward pass via a Pallas TPU kernel.

    x      : jnp array (..., i_dim), floating point (or int, promoted to f32)
    params : dict with 'min_x', 'max_x', 'mean_x', 'std_x', each shape (i_dim,)
    siren  : static bool choosing clip vs standardize path
    """
    orig_shape = x.shape
    orig_dtype = x.dtype
    d = orig_shape[-1]
    is_float = jnp.issubdtype(orig_dtype, jnp.floating)
    out_dtype = orig_dtype if is_float else jnp.float32
    compute_dtype = jnp.bfloat16 if orig_dtype == jnp.bfloat16 else jnp.float32

    # ---- Precompute per-feature affine coefficients (tiny (d,) arrays, f32) ----
    if siren:
        mn = jnp.asarray(params["min_x"], dtype=jnp.float32)
        mx = jnp.asarray(params["max_x"], dtype=jnp.float32)
        denom = mx - mn
        a = 2.0 / denom
        b = -2.0 * mn / denom - 1.0
    else:
        mu = jnp.asarray(params["mean_x"], dtype=jnp.float32)
        sd = jnp.asarray(params["std_x"], dtype=jnp.float32)
        a = 1.0 / sd
        b = -mu / sd

    # ---- Fold features into lanes: lane = multiple of both d and 128 ----
    flat = x.reshape(-1)
    total = flat.shape[0]
    base = (d * 128) // math.gcd(d, 128)  # lcm(d, 128)
    lane = base
    for mult in (8, 4, 2):                 # widen only if it divides evenly (no tail)
        if total % (base * mult) == 0:
            lane = base * mult
            break

    # Ragged tail: keep the lane-divisible prefix for the kernel, do the tiny
    # tail (< lane elements, still a multiple of d) in plain JAX — no full
    # tensor pad/copy.
    tail = total % lane
    main = total - tail

    def _tail_jax(t_flat):
        t = t_flat.reshape(-1, d).astype(jnp.float32)
        return ((t * a + b).astype(out_dtype)).reshape(-1)

    if main == 0:
        # Whole tensor smaller than one lane row — pure JAX, kernel not worth it.
        return _tail_jax(flat).reshape(orig_shape)

    itemsize = jnp.dtype(orig_dtype).itemsize
    out_itemsize = jnp.dtype(out_dtype).itemsize
    rows = main // lane
    x2 = flat[:main].reshape(rows, lane)

    # (a, b) packed into one (2, lane) constant slab in the compute dtype.
    reps = lane // d
    ab = jnp.stack([jnp.tile(a, reps), jnp.tile(b, reps)], axis=0).astype(compute_dtype)

    # ---- Row tile: dtype-aware sublane rounding + VMEM budget + pipeline depth ----
    sub = max(8, 32 // itemsize)           # 8 (f32) / 16 (bf16) / 32 (int8,fp8)
    bytes_per_row = lane * itemsize
    total_bytes = rows * bytes_per_row

    if total_bytes <= small_cutoff_bytes or rows <= sub:
        # Small tensor: single full-extent block; pipelining buys nothing here.
        tm = rows
    else:
        # VMEM-budgeted tile (default 2 MiB block -> ~8-9 MiB live with double
        # buffering; safe on v5e/v6e/v7x default scoped VMEM).
        tm_vmem = max(sub, min(4096, (target_block_bytes // bytes_per_row) // sub * sub))
        # Never collapse the pipeline: cap tm so the grid has >= 8 steps, which
        # also keeps the two v7x TensorCores well balanced under "parallel".
        min_steps = 8
        tm_cap = max(sub, (rows // min_steps) // sub * sub)
        tm = min(tm_vmem, tm_cap, rows)

    grid = (pl.cdiv(rows, tm),)

    n_main = rows * lane
    cost = pl.CostEstimate(
        flops=2 * n_main,
        transcendentals=0,
        bytes_accessed=n_main * itemsize + n_main * out_itemsize
        + 2 * lane * jnp.dtype(compute_dtype).itemsize,
    )

    out = pl.pallas_call(
        _affine_kernel,
        out_shape=jax.ShapeDtypeStruct((rows, lane), out_dtype),
        grid_spec=pltpu.PrefetchScalarGridSpec(
            num_scalar_prefetch=0,
            grid=grid,
            in_specs=[
                pl.BlockSpec((tm, lane), lambda i: (i, 0)),   # x tile
                pl.BlockSpec((2, lane), lambda i: (0, 0)),    # packed (a, b) slab
            ],
            out_specs=pl.BlockSpec((tm, lane), lambda i: (i, 0)),
        ),
        compiler_params=pltpu.CompilerParams(
            dimension_semantics=("parallel",),
            # NOTE: raise vmem_limit_bytes here if target_block_bytes is tuned
            # above ~3-4 MiB (v5e default scoped VMEM is 16 MiB, v7x physical
            # VMEM is 64 MiB).
        ),
        cost_estimate=cost,
    )(x2, ab)

    out_flat = out.reshape(-1)
    if tail:
        out_flat = jnp.concatenate([out_flat, _tail_jax(flat[main:])])
    return out_flat.reshape(orig_shape)


# ------------------------- Reference (pure JAX) -------------------------

def prepare_reference(x, params, *, siren):
    if siren:
        return 2.0 * (x - params["min_x"]) / (params["max_x"] - params["min_x"]) - 1.0
    return (x - params["mean_x"]) / params["std_x"]


# ------------------------- Main -------------------------

if __name__ == "__main__":
    key = jax.random.PRNGKey(0)
    k1, k2, k3, k4, k5 = jax.random.split(key, 5)

    i_dim = 8
    # Deterministic synthetic "preprop_params" (buffers of the module).
    min_x = jax.random.uniform(k2, (i_dim,), minval=-2.0, maxval=-1.0)
    max_x = jax.random.uniform(k3, (i_dim,), minval=1.0, maxval=2.0)
    mean_x = jax.random.normal(k4, (i_dim,)) * 0.1
    std_x = jax.random.uniform(k5, (i_dim,), minval=0.5, maxval=1.5)
    params = {"min_x": min_x, "max_x": max_x, "mean_x": mean_x, "std_x": std_x}

    # Primary small case consistent with CROM usage: x is (batch, points, i_dim).
    x_small = jax.random.normal(k1, (2, 16, i_dim), dtype=jnp.float32)

    # siren=True path (clipX)
    y_clip = prepare_forward(x_small, params, siren=True)
    jax.block_until_ready(y_clip)
    ref_clip = prepare_reference(x_small, params, siren=True)
    assert jnp.allclose(y_clip, ref_clip, atol=1e-5, rtol=1e-5), "clipX mismatch"

    # siren=False path (standardizeX)
    y_std = prepare_forward(x_small, params, siren=False)
    jax.block_until_ready(y_std)
    ref_std = prepare_reference(x_small, params, siren=False)
    assert jnp.allclose(y_std, ref_std, atol=1e-5, rtol=1e-5), "standardizeX mismatch"

    # Multi-block pipelined path (small block budget + zero small-cutoff forces
    # a grid with several steps, exercising the >=8-step tiling logic).
    x_med = jax.random.normal(k1, (2, 4608, i_dim), dtype=jnp.float32)
    y_med = prepare_forward(x_med, params, siren=True,
                            target_block_bytes=64 * 1024, small_cutoff_bytes=0)
    jax.block_until_ready(y_med)
    ref_med = prepare_reference(x_med, params, siren=True)
    assert jnp.allclose(y_med, ref_med, atol=1e-5, rtol=1e-5), "tiled clipX mismatch"

    # Ragged total: kernel on the lane-divisible prefix + plain-JAX tail (no pad copy).
    x_rag = jax.random.normal(k1, (2, 65, i_dim), dtype=jnp.float32)
    y_rag = prepare_forward(x_rag, params, siren=False)
    jax.block_until_ready(y_rag)
    ref_rag = prepare_reference(x_rag, params, siren=False)
    assert jnp.allclose(y_rag, ref_rag, atol=1e-5, rtol=1e-5), "ragged standardizeX mismatch"

    # Tiny tensor (< one lane row): pure-JAX fallback path.
    x_tiny = jax.random.normal(k1, (3, 5, i_dim), dtype=jnp.float32)
    y_tiny = prepare_forward(x_tiny, params, siren=False)
    jax.block_until_ready(y_tiny)
    ref_tiny = prepare_reference(x_tiny, params, siren=False)
    assert jnp.allclose(y_tiny, ref_tiny, atol=1e-5, rtol=1e-5), "tiny standardizeX mismatch"

    print("KERNEL_OK")
</pallas_src>

<mosaic_0001>
module attributes {stable_mosaic.version = 11 : i64} {
  func.func @_affine_kernel(%arg0: i32, %arg1: memref<1x256xf32, #tpu.memory_space<vmem>>, %arg2: memref<2x256xf32, #tpu.memory_space<vmem>>, %arg3: memref<1x256xf32, #tpu.memory_space<vmem>>) attributes {dimension_semantics = [#tpu.dimension_semantics<parallel>], iteration_bounds = array<i64: 1>, scalar_prefetch = 0 : i64, scratch_operands = 0 : i64, tpu.core_type = #tpu.core_type<tc>, window_params = [{transform_indices = @transform_0, window_bounds = array<i64: 1, 256>}, {pipeline_mode = #tpu.pipeline_mode<synchronous>, transform_indices = @transform_1, window_bounds = array<i64: 2, 256>}, {transform_indices = @transform_2, window_bounds = array<i64: 1, 256>}]} {
    %c0 = arith.constant 0 : index
    %c0_0 = arith.constant 0 : index
    %0 = vector.load %arg2[%c0, %c0_0] : memref<2x256xf32, #tpu.memory_space<vmem>>, vector<1x256xf32>
    %c1 = arith.constant 1 : index
    %c0_1 = arith.constant 0 : index
    %1 = vector.load %arg2[%c1, %c0_1] : memref<2x256xf32, #tpu.memory_space<vmem>>, vector<1x256xf32>
    %c0_2 = arith.constant 0 : index
    %c0_3 = arith.constant 0 : index
    %2 = vector.load %arg1[%c0_2, %c0_3] : memref<1x256xf32, #tpu.memory_space<vmem>>, vector<1x256xf32>
    %3 = arith.mulf %2, %0 : vector<1x256xf32>
    %4 = arith.addf %3, %1 : vector<1x256xf32>
    %c0_4 = arith.constant 0 : index
    %c0_5 = arith.constant 0 : index
    %5 = vector.load %arg3[%c0_4, %c0_5] : memref<1x256xf32, #tpu.memory_space<vmem>>, vector<1x256xf32>
    tpu.vector_store %arg3[%c0_4, %c0_5], %4 {strides = array<i32>} : memref<1x256xf32, #tpu.memory_space<vmem>>, vector<1x256xf32>,
    return
  }
  func.func @transform_0(%arg0: i32) -> (i32, i32) {
    %c0_i32 = arith.constant 0 : i32
    %c0_i32_0 = arith.constant 0 : i32
    return %arg0, %c0_i32 : i32, i32
  }
  func.func @transform_1(%arg0: i32) -> (i32, i32) {
    %c0_i32 = arith.constant 0 : i32
    %c0_i32_0 = arith.constant 0 : i32
    %c0_i32_1 = arith.constant 0 : i32
    return %c0_i32, %c0_i32_0 : i32, i32
  }
  func.func @transform_2(%arg0: i32) -> (i32, i32) {
    %c0_i32 = arith.constant 0 : i32
    %c0_i32_0 = arith.constant 0 : i32
    return %arg0, %c0_i32 : i32, i32
  }
}

</mosaic_0001>

<llo_original>
// kernel: tpu_custom_call.1
$region0: #{tpu_custom_call.1}
  #allocation0 [shape = 'u32[]', space=smem, size = 0x4, offset = 0x4, fixed_abs, tag = 'smem constant byte address 0x4 - core index']
  #allocation1 [shape = 'u32[144,128]{1,0:T(1,128)}', space=vmem, size = 0x12000, scoped, tag = 'internal scratch']
  %s0 = inlined_call_operand.hbm [shape: f32[1,256], index: 0, kind: input, shape index: {}]
  %s1 = inlined_call_operand.hbm [shape: f32[2,256], index: 1, kind: input, shape index: {}]
  %s2 = inlined_call_operand.hbm [shape: f32[1,256], index: 2, kind: output, shape index: {}]
  %s3 = sld [smem:[#allocation0]]
  $region26: #{tpu_custom_call.1} parent=0
    _
  %s5 = ssub.s32 1, %s3
  %s6 = scalar_select 0, %s5, %s3
  $region1: #{tpu_custom_call.1} parent=0
    #allocation2 [shape = 'u8[1024]{0}', space=vmem, size = 0x400, scoped, tag = 'input window, operand 0, single buffered']
    #allocation3 [shape = 's32[1]{0}', space=sflag, size = 0x4, scoped, tag = 'scoped memory for tpu_custom_call.1']
    #allocation4 [shape = 's32[1]{0}', space=sflag, size = 0x4, scoped, tag = 'scoped memory for tpu_custom_call.1']
    #allocation5 [shape = 'u8[2048]{0}', space=vmem, size = 0x800, scoped, tag = 'input window, operand 1, single buffered']
    #allocation6 [shape = 's32[1]{0}', space=sflag, size = 0x4, scoped, tag = 'scoped memory for tpu_custom_call.1']
    #allocation7 [shape = 'u8[1024]{0}', space=vmem, size = 0x400, scoped, tag = 'output window, operand 0, single buffered']
    %7 = vsyncpa [#allocation3], 0
    %8 = vsyncpa [#allocation6], 0
    %9 = vsyncpa [#allocation4], 0
    // Predicated region
    $region2: #{tpu_custom_call.1} parent=1 // pred_check
      _
    $region3: #{tpu_custom_call.1} parent=1 // pred_check_branch
      %11 = sbr.rel (0) target = $region5
    $region4: #{tpu_custom_call.1} parent=1 // pred_region
      %s13 = ssub.s32 32, 32
      %14 = vsyncadd [#allocation3], %s13
      %s16 = sshll.u32 [#allocation2], 4
      %s17 = int_to_ptr.vmem [resolvable:$true] %s16
      %19 = dma.hbm_to_vmem [thread:$0]  %s0, 32, %s17, [#allocation3]
    $region5: #{tpu_custom_call.1} parent=1 // pred_fallthru
      _
    // Predicated region
    $region6: #{tpu_custom_call.1} parent=1 // pred_check
      _
    $region7: #{tpu_custom_call.1} parent=1 // pred_check_branch
      %21 = sbr.rel (0) target = $region9
    $region8: #{tpu_custom_call.1} parent=1 // pred_region
      %s23 = ssub.s32 64, 64
      %24 = vsyncadd [#allocation6], %s23
      %s26 = sshll.u32 [#allocation5], 4
      %s27 = int_to_ptr.vmem [resolvable:$true] %s26
      %29 = dma.hbm_to_vmem [thread:$0]  %s1, 64, %s27, [#allocation6]
    $region9: #{tpu_custom_call.1} parent=1 // pred_fallthru
      _
    // Predicated region
    $region10: #{tpu_custom_call.1} parent=1 // pred_check
      _
    $region11: #{tpu_custom_call.1} parent=1 // pred_check_branch
      %31 = sbr.rel (0) target = $region13
    $region12: #{tpu_custom_call.1} parent=1 // pred_region
      %32 = dma.done [#allocation3], 32
    $region13: #{tpu_custom_call.1} parent=1 // pred_fallthru
      _
    // Predicated region
    $region14: #{tpu_custom_call.1} parent=1 // pred_check
      _
    $region15: #{tpu_custom_call.1} parent=1 // pred_check_branch
      %34 = sbr.rel (0) target = $region17
    $region16: #{tpu_custom_call.1} parent=1 // pred_region
      %35 = dma.done [#allocation6], 64
    $region17: #{tpu_custom_call.1} parent=1 // pred_fallthru
      _
    %v36 = vld [vmem:[#allocation5] ss:$2 sm:$0x3]
    %s37 = scalar_lea.vmem [#allocation5], 1
    %v38 = vld [vmem:[%s37] ss:$2 sm:$0x3]
    %v39 = vld [vmem:[#allocation2] sm:$0x3]
    %v40 = vmul.f32 %v39, %v36
    %v41 = vadd.f32 %v40, %v38
    %v42 = vlaneseq
    %vm43 = vcmp.ge.s32.totalorder %v42, 0
    %vm44 = vcmp.lt.s32.totalorder %v42, 256
    %vm45 = vmand %vm43, %vm44
    %46 = vst.msk [vmem:[#allocation7] sm:$0x3] %vm45, %v41
    // Predicated region
    $region18: #{tpu_custom_call.1} parent=1 // pred_check
      _
    $region19: #{tpu_custom_call.1} parent=1 // pred_check_branch
      %48 = sbr.rel (0) target = $region21
    $region20: #{tpu_custom_call.1} parent=1 // pred_region
      %s50 = ssub.s32 32, 32
      %51 = vsyncadd [#allocation4], %s50
      %s53 = sshll.u32 [#allocation7], 4
      %s54 = int_to_ptr.vmem [resolvable:$true] %s53
      %56 = dma.vmem_to_hbm [thread:$0]  %s54, 32, %s2, [#allocation4]
    $region21: #{tpu_custom_call.1} parent=1 // pred_fallthru
      _
    // Predicated region
    $region22: #{tpu_custom_call.1} parent=1 // pred_check
      _
    $region23: #{tpu_custom_call.1} parent=1 // pred_check_branch
      %58 = sbr.rel (0) target = $region25
    $region24: #{tpu_custom_call.1} parent=1 // pred_region
      %59 = dma.done [#allocation4], 32
    $region25: #{tpu_custom_call.1} parent=1 // pred_fallthru
      _
    %60 = vsyncpa [#allocation3], 1
    %61 = vsyncpa [#allocation6], 1
    %62 = vsyncpa [#allocation4], 1

</llo_original>
